<compile_context>
chip_gen: v6e
topology: v6e:2x2x1
jax: 0.10.0
libtpu: 0.0.40
codegen_flags: <defaults>
</compile_context>

<pallas_src>
import functools
import math

import jax
import jax.numpy as jnp
from jax import lax
from jax.experimental import pallas as pl
from jax.experimental.pallas import tpu as pltpu

DROPOUT = 0.2
N_EMBD = 64


def _round_up(x, m):
    return (x + m - 1) // m * m


def _ffn_kernel(*refs, apply_dropout):
    if apply_dropout:
        seed_ref, x_ref, w1_ref, b1_ref, w2_ref, b2_ref, o_ref = refs
    else:
        x_ref, w1_ref, b1_ref, w2_ref, b2_ref, o_ref = refs
        seed_ref = None

    # ---- Linear 1: (tile_m, C) @ (C, 4C) + b1  (MXU: bf16 in, f32 accumulate) ----
    x = x_ref[...]
    h = jnp.dot(x.astype(jnp.bfloat16), w1_ref[...],
                preferred_element_type=jnp.float32)
    h = h + b1_ref[...]

    # ---- exact (erf-based) GELU, matching torch.nn.GELU() default ----
    h = 0.5 * h * (1.0 + lax.erf(h * (1.0 / math.sqrt(2.0))))

    # ---- Linear 2: (tile_m, 4C) @ (4C, C) + b2 ----
    y = jnp.dot(h.astype(jnp.bfloat16), w2_ref[...],
                preferred_element_type=jnp.float32)
    y = y + b2_ref[...]

    # ---- inverted dropout (training mode) ----
    if apply_dropout:
        tile_rows = o_ref.shape[0]
        row0 = (pl.program_id(0) * tile_rows).astype(jnp.uint32)   # global row offset
        rows = lax.broadcasted_iota(jnp.int32, y.shape, 0).astype(jnp.uint32) + row0
        cols = lax.broadcasted_iota(jnp.int32, y.shape, 1).astype(jnp.uint32)
        seed = seed_ref[0].astype(jnp.uint32)
        # Counter-based hash PRNG (murmur3 fmix32 finalizer), keyed on the global
        # element position so every tile gets an independent mask and the result
        # does not depend on the tiling choice.
        h32 = rows * jnp.uint32(0x9E3779B1)
        h32 = h32 ^ (cols * jnp.uint32(0x85EBCA77))
        h32 = h32 + seed * jnp.uint32(0xC2B2AE3D)
        h32 = h32 ^ (h32 >> 16)
        h32 = h32 * jnp.uint32(0x7FEB352D)
        h32 = h32 ^ (h32 >> 15)
        h32 = h32 * jnp.uint32(0x846CA68B)
        h32 = h32 ^ (h32 >> 16)
        thresh = jnp.uint32(round(DROPOUT * (2 ** 32)))            # P(drop) = DROPOUT
        keep = h32 >= thresh
        y = jnp.where(keep, y * (1.0 / (1.0 - DROPOUT)), 0.0)

    o_ref[...] = y.astype(o_ref.dtype)


def feed_forward(x, w1, b1, w2, b2, seed=None, *, training=True, tile_m_max=1024):
    """x: (..., n_embd) float32.  w1: (C, 4C), b1: (4C,), w2: (4C, C), b2: (C,)."""
    orig_shape = x.shape
    C = orig_shape[-1]
    H = w1.shape[1]
    M = 1
    for d in orig_shape[:-1]:
        M *= d
    x2d = x.reshape(M, C).astype(jnp.float32)

    apply_dropout = bool(training) and DROPOUT > 0.0

    # Row tiling: tile_m is a multiple of 8 sublanes; pad M up to whole tiles.
    tile_m = min(tile_m_max, _round_up(M, 8))
    m_pad = _round_up(M, tile_m)
    if m_pad != M:
        x2d = jnp.pad(x2d, ((0, m_pad - M), (0, 0)))
    grid = (m_pad // tile_m,)

    # Weights to bf16 once (MXU-native); biases stay f32, broadcast as (1, dim).
    w1b = w1.astype(jnp.bfloat16)
    w2b = w2.astype(jnp.bfloat16)
    b1r = b1.reshape(1, H).astype(jnp.float32)
    b2r = b2.reshape(1, C).astype(jnp.float32)

    kernel = functools.partial(_ffn_kernel, apply_dropout=apply_dropout)

    in_specs = [
        pl.BlockSpec((tile_m, C), lambda i, *_: (i, 0)),   # x tile (pipelined)
        pl.BlockSpec((C, H), lambda i, *_: (0, 0)),        # w1 (VMEM-resident)
        pl.BlockSpec((1, H), lambda i, *_: (0, 0)),        # b1
        pl.BlockSpec((H, C), lambda i, *_: (0, 0)),        # w2
        pl.BlockSpec((1, C), lambda i, *_: (0, 0)),        # b2
    ]
    out_specs = pl.BlockSpec((tile_m, C), lambda i, *_: (i, 0))

    cost = pl.CostEstimate(
        flops=4 * m_pad * C * H,                 # two matmuls
        transcendentals=m_pad * H,               # erf per hidden element
        bytes_accessed=(m_pad * C * 4) * 2 + w1b.size * 2 + w2b.size * 2
                       + b1r.size * 4 + b2r.size * 4,
    )

    grid_spec = pltpu.PrefetchScalarGridSpec(
        num_scalar_prefetch=1 if apply_dropout else 0,
        grid=grid,
        in_specs=in_specs,
        out_specs=out_specs,
    )

    operands = (x2d, w1b, b1r, w2b, b2r)
    if apply_dropout:
        if seed is None:
            seed = jnp.zeros((1,), jnp.int32)
        operands = (jnp.asarray(seed, jnp.int32).reshape((1,)),) + operands

    out2d = pl.pallas_call(
        kernel,
        out_shape=jax.ShapeDtypeStruct((m_pad, C), jnp.float32),
        grid_spec=grid_spec,
        compiler_params=pltpu.CompilerParams(
            dimension_semantics=("parallel",)),
        cost_estimate=cost,
    )(*operands)

    if m_pad != M:
        out2d = out2d[:M]
    return out2d.reshape(orig_shape)


def init_params(key, n_embd):
    """Deterministic init mirroring torch.nn.Linear's U(-1/sqrt(fan_in), ...)."""
    hid = 4 * n_embd
    k1, k2, k3, k4 = jax.random.split(key, 4)
    bound1 = 1.0 / math.sqrt(n_embd)
    bound2 = 1.0 / math.sqrt(hid)
    # stored transposed vs. torch: (in_features, out_features)
    w1 = jax.random.uniform(k1, (n_embd, hid), jnp.float32, -bound1, bound1)
    b1 = jax.random.uniform(k2, (hid,), jnp.float32, -bound1, bound1)
    w2 = jax.random.uniform(k3, (hid, n_embd), jnp.float32, -bound2, bound2)
    b2 = jax.random.uniform(k4, (n_embd,), jnp.float32, -bound2, bound2)
    return w1, b1, w2, b2


def _reference_eval(x, w1, b1, w2, b2):
    """Pure-JAX f32 reference of the module in eval mode (dropout = identity)."""
    h = x @ w1 + b1
    h = 0.5 * h * (1.0 + lax.erf(h / math.sqrt(2.0)))
    return h @ w2 + b2


if __name__ == "__main__":
    key = jax.random.PRNGKey(0)
    k_x, k_p = jax.random.split(key)

    B, T = 2, 8                      # small shapes: batch=2, seq=8, n_embd=64
    x = jax.random.normal(k_x, (B, T, N_EMBD), jnp.float32)
    w1, b1, w2, b2 = init_params(k_p, N_EMBD)
    seed = jnp.array([0], dtype=jnp.int32)

    # Training mode (with in-kernel dropout).
    out_train = jax.block_until_ready(
        feed_forward(x, w1, b1, w2, b2, seed, training=True))
    assert out_train.shape == (B, T, N_EMBD)
    assert out_train.dtype == jnp.float32
    frac_dropped = float(jnp.mean(out_train == 0.0))
    assert 0.05 < frac_dropped < 0.4, frac_dropped   # ~DROPOUT expected

    # Eval mode (dropout off) vs pure-JAX reference (bf16-matmul tolerance).
    out_eval = jax.block_until_ready(feed_forward(x, w1, b1, w2, b2, training=False))
    ref = _reference_eval(x, w1, b1, w2, b2)
    assert jnp.allclose(out_eval, ref, atol=3e-2, rtol=3e-2)

    print("KERNEL_OK")
</pallas_src>

<mosaic_0001>
module attributes {stable_mosaic.version = 11 : i64} {
  func.func @_ffn_kernel(%arg0: i32, %arg1: memref<1xi32, #tpu.memory_space<smem>>, %arg2: memref<16x64xf32, #tpu.memory_space<vmem>>, %arg3: memref<64x256xbf16, #tpu.memory_space<vmem>>, %arg4: memref<1x256xf32, #tpu.memory_space<vmem>>, %arg5: memref<256x64xbf16, #tpu.memory_space<vmem>>, %arg6: memref<1x64xf32, #tpu.memory_space<vmem>>, %arg7: memref<16x64xf32, #tpu.memory_space<vmem>>) attributes {dimension_semantics = [#tpu.dimension_semantics<parallel>], iteration_bounds = array<i64: 1>, scalar_prefetch = 1 : i64, scratch_operands = 0 : i64, tpu.core_type = #tpu.core_type<tc>, window_params = [{transform_indices = @transform_0, window_bounds = array<i64: 16, 64>}, {pipeline_mode = #tpu.pipeline_mode<synchronous>, transform_indices = @transform_1, window_bounds = array<i64: 64, 256>}, {pipeline_mode = #tpu.pipeline_mode<synchronous>, transform_indices = @transform_2, window_bounds = array<i64: 1, 256>}, {pipeline_mode = #tpu.pipeline_mode<synchronous>, transform_indices = @transform_3, window_bounds = array<i64: 256, 64>}, {pipeline_mode = #tpu.pipeline_mode<synchronous>, transform_indices = @transform_4, window_bounds = array<i64: 1, 64>}, {transform_indices = @transform_5, window_bounds = array<i64: 16, 64>}]} {
    %c0 = arith.constant 0 : index
    %c0_0 = arith.constant 0 : index
    %0 = vector.load %arg2[%c0, %c0_0] : memref<16x64xf32, #tpu.memory_space<vmem>>, vector<16x64xf32>
    %1 = arith.truncf %0 : vector<16x64xf32> to vector<16x64xbf16>
    %c0_1 = arith.constant 0 : index
    %c0_2 = arith.constant 0 : index
    %2 = vector.load %arg3[%c0_1, %c0_2] : memref<64x256xbf16, #tpu.memory_space<vmem>>, vector<64x256xbf16>
    %cst = arith.constant dense<0.000000e+00> : vector<16x256xf32>
    %3 = tpu.matmul %1, %2, %cst {dimension_numbers = #tpu.dot_dimension_numbers<[1], [0], [0], [1], [0, 0, 1, 1], [], []>} : vector<16x64xbf16>, vector<64x256xbf16>, vector<16x256xf32> -> vector<16x256xf32>
    %c0_3 = arith.constant 0 : index
    %c0_4 = arith.constant 0 : index
    %4 = vector.load %arg4[%c0_3, %c0_4] : memref<1x256xf32, #tpu.memory_space<vmem>>, vector<1x256xf32>
    %5 = vector.broadcast %4 : vector<1x256xf32> to vector<16x256xf32>
    %6 = arith.addf %3, %5 : vector<16x256xf32>
    %cst_5 = arith.constant 5.000000e-01 : f32
    %7 = vector.broadcast %cst_5 : f32 to vector<16x256xf32>
    %8 = arith.mulf %7, %6 : vector<16x256xf32>
    %cst_6 = arith.constant 0.707106769 : f32
    %9 = vector.broadcast %cst_6 : f32 to vector<16x256xf32>
    %10 = arith.mulf %6, %9 : vector<16x256xf32>
    %11 = math.erf %10 : vector<16x256xf32>
    %cst_7 = arith.constant 1.000000e+00 : f32
    %12 = vector.broadcast %cst_7 : f32 to vector<16x256xf32>
    %13 = arith.addf %12, %11 : vector<16x256xf32>
    %14 = arith.mulf %8, %13 : vector<16x256xf32>
    %15 = arith.truncf %14 : vector<16x256xf32> to vector<16x256xbf16>
    %c0_8 = arith.constant 0 : index
    %c0_9 = arith.constant 0 : index
    %16 = vector.load %arg5[%c0_8, %c0_9] : memref<256x64xbf16, #tpu.memory_space<vmem>>, vector<256x64xbf16>
    %cst_10 = arith.constant dense<0.000000e+00> : vector<16x64xf32>
    %17 = tpu.matmul %15, %16, %cst_10 {dimension_numbers = #tpu.dot_dimension_numbers<[1], [0], [0], [1], [0, 0, 1, 1], [], []>} : vector<16x256xbf16>, vector<256x64xbf16>, vector<16x64xf32> -> vector<16x64xf32>
    %c0_11 = arith.constant 0 : index
    %c0_12 = arith.constant 0 : index
    %18 = vector.load %arg6[%c0_11, %c0_12] : memref<1x64xf32, #tpu.memory_space<vmem>>, vector<1x64xf32>
    %19 = vector.broadcast %18 : vector<1x64xf32> to vector<16x64xf32>
    %20 = arith.addf %17, %19 : vector<16x64xf32>
    %c16_i32 = arith.constant 16 : i32
    %21 = arith.muli %arg0, %c16_i32 : i32
    %22 = tpu.iota {dimensions = array<i32: 0>} : vector<16x64xi32>
    %23 = vector.broadcast %21 : i32 to vector<16x64xi32>
    %24 = arith.addi %22, %23 : vector<16x64xi32>
    %25 = tpu.iota {dimensions = array<i32: 1>} : vector<16x64xi32>
    %c0_13 = arith.constant 0 : index
    %26 = memref.load %arg1[%c0_13] : memref<1xi32, #tpu.memory_space<smem>>
    %c-1640531535_i32 = arith.constant -1640531535 : i32
    %27 = vector.broadcast %c-1640531535_i32 : i32 to vector<16x64xi32>
    %28 = arith.muli %24, %27 : vector<16x64xi32>
    %c-2048144777_i32 = arith.constant -2048144777 : i32
    %29 = vector.broadcast %c-2048144777_i32 : i32 to vector<16x64xi32>
    %30 = arith.muli %25, %29 : vector<16x64xi32>
    %31 = arith.xori %28, %30 : vector<16x64xi32>
    %c-1028477379_i32 = arith.constant -1028477379 : i32
    %32 = arith.muli %26, %c-1028477379_i32 : i32
    %33 = vector.broadcast %32 : i32 to vector<16x64xi32>
    %34 = arith.addi %31, %33 : vector<16x64xi32>
    %c16_i32_14 = arith.constant 16 : i32
    %35 = vector.broadcast %c16_i32_14 : i32 to vector<16x64xi32>
    %36 = arith.shrui %34, %35 : vector<16x64xi32>
    %37 = arith.xori %34, %36 : vector<16x64xi32>
    %c2146121005_i32 = arith.constant 2146121005 : i32
    %38 = vector.broadcast %c2146121005_i32 : i32 to vector<16x64xi32>
    %39 = arith.muli %37, %38 : vector<16x64xi32>
    %c15_i32 = arith.constant 15 : i32
    %40 = vector.broadcast %c15_i32 : i32 to vector<16x64xi32>
    %41 = arith.shrui %39, %40 : vector<16x64xi32>
    %42 = arith.xori %39, %41 : vector<16x64xi32>
    %c-2073254261_i32 = arith.constant -2073254261 : i32
    %43 = vector.broadcast %c-2073254261_i32 : i32 to vector<16x64xi32>
    %44 = arith.muli %42, %43 : vector<16x64xi32>
    %c16_i32_15 = arith.constant 16 : i32
    %45 = vector.broadcast %c16_i32_15 : i32 to vector<16x64xi32>
    %46 = arith.shrui %44, %45 : vector<16x64xi32>
    %47 = arith.xori %44, %46 : vector<16x64xi32>
    %c858993459_i32 = arith.constant 858993459 : i32
    %48 = vector.broadcast %c858993459_i32 : i32 to vector<16x64xi32>
    %49 = arith.cmpi uge, %47, %48 : vector<16x64xi32>
    %cst_16 = arith.constant 1.250000e+00 : f32
    %50 = vector.broadcast %cst_16 : f32 to vector<16x64xf32>
    %51 = arith.mulf %20, %50 : vector<16x64xf32>
    %cst_17 = arith.constant 0.000000e+00 : f32
    %52 = vector.broadcast %cst_17 : f32 to vector<16x64xf32>
    %53 = arith.select %49, %51, %52 : vector<16x64xi1>, vector<16x64xf32>
    %c0_18 = arith.constant 0 : index
    %c0_19 = arith.constant 0 : index
    %54 = vector.load %arg7[%c0_18, %c0_19] : memref<16x64xf32, #tpu.memory_space<vmem>>, vector<16x64xf32>
    tpu.vector_store %arg7[%c0_18, %c0_19], %53 {strides = array<i32>} : memref<16x64xf32, #tpu.memory_space<vmem>>, vector<16x64xf32>,
    return
  }
  func.func @transform_0(%arg0: i32, %arg1: memref<1xi32, #tpu.memory_space<smem>>) -> (i32, i32) {
    %c0_i32 = arith.constant 0 : i32
    %c0_i32_0 = arith.constant 0 : i32
    return %arg0, %c0_i32 : i32, i32
  }
  func.func @transform_1(%arg0: i32, %arg1: memref<1xi32, #tpu.memory_space<smem>>) -> (i32, i32) {
    %c0_i32 = arith.constant 0 : i32
    %c0_i32_0 = arith.constant 0 : i32
    %c0_i32_1 = arith.constant 0 : i32
    return %c0_i32, %c0_i32_0 : i32, i32
  }
  func.func @transform_2(%arg0: i32, %arg1: memref<1xi32, #tpu.memory_space<smem>>) -> (i32, i32) {
    %c0_i32 = arith.constant 0 : i32
    %c0_i32_0 = arith.constant 0 : i32
    %c0_i32_1 = arith.constant 0 : i32
    return %c0_i32, %c0_i32_0 : i32, i32
  }
  func.func @transform_3(%arg0: i32, %arg1: memref<1xi32, #tpu.memory_space<smem>>) -> (i32, i32) {
    %c0_i32 = arith.constant 0 : i32
    %c0_i32_0 = arith.constant 0 : i32
    %c0_i32_1 = arith.constant 0 : i32
    return %c0_i32, %c0_i32_0 : i32, i32
  }
  func.func @transform_4(%arg0: i32, %arg1: memref<1xi32, #tpu.memory_space<smem>>) -> (i32, i32) {
    %c0_i32 = arith.constant 0 : i32
    %c0_i32_0 = arith.constant 0 : i32
    %c0_i32_1 = arith.constant 0 : i32
    return %c0_i32, %c0_i32_0 : i32, i32
  }
  func.func @transform_5(%arg0: i32, %arg1: memref<1xi32, #tpu.memory_space<smem>>) -> (i32, i32) {
    %c0_i32 = arith.constant 0 : i32
    %c0_i32_0 = arith.constant 0 : i32
    return %arg0, %c0_i32 : i32, i32
  }
}

</mosaic_0001>

<llo_original>
// kernel: tpu_custom_call.1
$region0: #{tpu_custom_call.1}
  #allocation0 [shape = 'u32[]', space=smem, size = 0x4, offset = 0x4, fixed_abs, tag = 'smem constant byte address 0x4 - core index']
  #allocation1 [shape = 'u32[144,128]{1,0:T(1,128)}', space=vmem, size = 0x12000, scoped, tag = 'internal scratch']
  #allocation2 [shape = 's32[1]{0}', space=sflag, size = 0x4, scoped, tag = 'scoped memory for tpu_custom_call.1']
  #allocation3 [shape = 's32[1]{0:T(128)S(6)}', space=smem, size = 0x200, scoped, tag = 'prefetched SMEM operand 0']
  %s0 = inlined_call_operand.<no memory space> [shape: s32[1], index: 0, kind: input, shape index: {}]
  %s1 = inlined_call_operand.vmem [shape: f32[16,64], index: 1, kind: input, shape index: {}]
  %s2 = inlined_call_operand.vmem [shape: bf16[64,256], index: 2, kind: input, shape index: {}]
  %s3 = inlined_call_operand.vmem [shape: f32[1,256], index: 3, kind: input, shape index: {}]
  %s4 = inlined_call_operand.vmem [shape: bf16[256,64], index: 4, kind: input, shape index: {}]
  %s5 = inlined_call_operand.vmem [shape: f32[1,64], index: 5, kind: input, shape index: {}]
  %s6 = inlined_call_operand.hbm [shape: f32[16,64], index: 6, kind: output, shape index: {}]
  %s7 = sld [smem:[#allocation0]]
  $region30: #{tpu_custom_call.1} parent=0
    _
  %s9 = ssub.s32 1, %s7
  %s10 = scalar_select 0, %s9, %s7
  %11 = sst [smem:[#allocation3]] %s0
  $region1: #{tpu_custom_call.1} parent=0
    #allocation4 [shape = 'u8[8192]{0}', space=vmem, size = 0x2000, scoped, tag = 'output window, operand 0, single buffered']
    #allocation5 [shape = 's32[1]{0}', space=sflag, size = 0x4, scoped, tag = 'scoped memory for tpu_custom_call.1']
    %12 = vsyncpa [#allocation5], 0
    // Predicated region
    $region2: #{tpu_custom_call.1} parent=1 // pred_check
      _
    $region3: #{tpu_custom_call.1} parent=1 // pred_check_branch
      %14 = sbr.rel (0) target = $region5
    $region4: #{tpu_custom_call.1} parent=1 // pred_region
      _
    $region5: #{tpu_custom_call.1} parent=1 // pred_fallthru
      _
    // Predicated region
    $region6: #{tpu_custom_call.1} parent=1 // pred_check
      _
    $region7: #{tpu_custom_call.1} parent=1 // pred_check_branch
      %16 = sbr.rel (0) target = $region9
    $region8: #{tpu_custom_call.1} parent=1 // pred_region
      _
    $region9: #{tpu_custom_call.1} parent=1 // pred_fallthru
      _
    // Predicated region
    $region10: #{tpu_custom_call.1} parent=1 // pred_check
      _
    $region11: #{tpu_custom_call.1} parent=1 // pred_check_branch
      %18 = sbr.rel (0) target = $region13
    $region12: #{tpu_custom_call.1} parent=1 // pred_region
      _
    $region13: #{tpu_custom_call.1} parent=1 // pred_fallthru
      _
    // Predicated region
    $region14: #{tpu_custom_call.1} parent=1 // pred_check
      _
    $region15: #{tpu_custom_call.1} parent=1 // pred_check_branch
      %20 = sbr.rel (0) target = $region17
    $region16: #{tpu_custom_call.1} parent=1 // pred_region
      _
    $region17: #{tpu_custom_call.1} parent=1 // pred_fallthru
      _
    // Predicated region
    $region18: #{tpu_custom_call.1} parent=1 // pred_check
      _
    $region19: #{tpu_custom_call.1} parent=1 // pred_check_branch
      %22 = sbr.rel (0) target = $region21
    $region20: #{tpu_custom_call.1} parent=1 // pred_region
      _
    $region21: #{tpu_custom_call.1} parent=1 // pred_fallthru
      _
    %v24 = vld [vmem:[%s1] sm:$0xff]
    %v25 = vld [vmem:[%s1 + $0x8] sm:$0xff]
    %v26 = vpack.c.bf16 %v25, %v24
    %v27 = vld [vmem:[%s2] sm:$0xff]
    %v28 = vld [vmem:[%s2 + $0x8] sm:$0xff]
    %v29 = vld [vmem:[%s2 + $0x10] sm:$0xff]
    %v30 = vld [vmem:[%s2 + $0x18] sm:$0xff]
    %v31 = vld [vmem:[%s2 + $0x20] sm:$0xff]
    %v32 = vld [vmem:[%s2 + $0x28] sm:$0xff]
    %v33 = vld [vmem:[%s2 + $0x30] sm:$0xff]
    %v34 = vld [vmem:[%s2 + $0x38] sm:$0xff]
    %v35 = vld [vmem:[%s3] sm:$0x3]
    %v37 = vlaneseq
    %v38 = vshrl.u32 %v37, 7
    %v39 = vsub.s32 0, %v38
    %v40 = vrot.slane %v35, %v39
    %v41 = vlaneseq
    %v42 = vshrl.u32 %v41, 7
    %v43 = vsub.s32 1, %v42
    %v44 = vrot.slane %v35, %v43
    %v55 = vunpack.c.l.b16 %v27
    %v56 = vunpack.c.h.b16 %v27
    %v57 = vunpack.c.l.b16 %v28
    %v58 = vunpack.c.h.b16 %v28
    %v59 = vunpack.c.l.b16 %v29
    %v60 = vunpack.c.h.b16 %v29
    %v61 = vunpack.c.l.b16 %v30
    %v62 = vunpack.c.h.b16 %v30
    %v63 = vunpack.c.l.b16 %v31
    %v64 = vunpack.c.h.b16 %v31
    %v65 = vunpack.c.l.b16 %v32
    %v66 = vunpack.c.h.b16 %v32
    %v67 = vunpack.c.l.b16 %v33
    %v68 = vunpack.c.h.b16 %v33
    %v69 = vunpack.c.l.b16 %v34
    %v70 = vunpack.c.h.b16 %v34
    %v71 = vpack.c.b16 %v57, %v55
    %v72 = vpack.c.b16 %v58, %v56
    %v73 = vpack.c.b16 %v61, %v59
    %v74 = vpack.c.b16 %v62, %v60
    %v75 = vpack.c.b16 %v65, %v63
    %v76 = vpack.c.b16 %v66, %v64
    %v77 = vpack.c.b16 %v69, %v67
    %v78 = vpack.c.b16 %v70, %v68
    %vm87 = vcmask 523264
    %v89 = vsel %vm87, %v26, 0
    %91 = vmatprep.subr.bf16.mxu0 0
    %92 = vmatpush1.bf16.msra.mxu0 0
    %93 = vmatprep.subr.bf16.mxu0 0
    %94 = vmatpush1.bf16.msra.mxu0 0
    %95 = vmatprep.subr.bf16.mxu0 0
    %96 = vmatpush1.bf16.msra.mxu0 0
    %97 = vmatprep.subr.bf16.mxu0 0
    %98 = vmatpush1.bf16.msra.mxu0 0
    %99 = vmatprep.subr.bf16.mxu0 %v78
    %100 = vmatpush1.bf16.msra.mxu0 %v77
    %101 = vmatprep.subr.bf16.mxu0 %v76
    %102 = vmatpush1.bf16.msra.mxu0 %v75
    %103 = vmatprep.subr.bf16.mxu0 %v74
    %104 = vmatpush1.bf16.msra.mxu0 %v73
    %105 = vmatprep.subr.bf16.mxu0 %v72
    %106 = vmatpush1.bf16.msra.mxu0 %v71
    %107 = vmatprep.subr.bf16.mxu0 0
    %108 = vmatpush2.bf16.msra.mxu0 0
    %109 = vmatprep.subr.bf16.mxu0 0
    %110 = vmatpush2.bf16.msra.mxu0 0
    %111 = vmatprep.subr.bf16.mxu0 0
    %112 = vmatpush2.bf16.msra.mxu0 0
    %113 = vmatprep.subr.bf16.mxu0 0
    %114 = vmatpush2.bf16.msra.mxu0 0
    %115 = vmatprep.subr.bf16.mxu0 0
    %116 = vmatpush2.bf16.msra.mxu0 0
    %117 = vmatprep.subr.bf16.mxu0 0
    %118 = vmatpush2.bf16.msra.mxu0 0
    %119 = vmatprep.subr.bf16.mxu0 0
    %120 = vmatpush2.bf16.msra.mxu0 0
    %121 = vmatprep.subr.bf16.mxu0 0
    %122 = vmatpush2.bf16.msra.mxu0 0
    %123 = vmatprep.mubr.bf16.mxu0 0
    %124 = vmatmul.mubr.bf16.gmra.mxu0 %v89
    %v125 = vpop.f32.mrf.mxu0
    %v126 = vadd.f32 %v40, %v125
    %v127 = vpop.f32.mrf.mxu0
    %v128 = vadd.f32 %v44, %v127
    %v129 = vpop.f32.mrf.mxu0
    %v130 = vadd.f32 %v40, %v129
    %v131 = vpop.f32.mrf.mxu0
    %v132 = vadd.f32 %v44, %v131
    %133 = vdwg.mxu0
    %v134 = vmul.f32 %v126, 0.5
    %v135 = vmul.f32 %v128, 0.5
    %v136 = vmul.f32 %v130, 0.5
    %v137 = vmul.f32 %v132, 0.5
    %v138 = vmul.f32 %v126, 0.70710677
    %v139 = vmul.f32 %v128, 0.70710677
    %v140 = vmul.f32 %v130, 0.70710677
    %v141 = vmul.f32 %v132, 0.70710677
    %v142 = verf.f32.pop %v138
    %v143 = verf.f32.pop %v139
    %v144 = verf.f32.pop %v140
    %v145 = verf.f32.pop %v141
    %v146 = vadd.f32 %v142, 1.0
    %v147 = vadd.f32 %v143, 1.0
    %v148 = vadd.f32 %v144, 1.0
    %v149 = vadd.f32 %v145, 1.0
    %v150 = vmul.f32 %v134, %v146
    %v151 = vmul.f32 %v135, %v147
    %v152 = vmul.f32 %v136, %v148
    %v153 = vmul.f32 %v137, %v149
    %v154 = vpack.c.bf16 %v152, %v150
    %v155 = vpack.c.bf16 %v153, %v151
    %v156 = vld [vmem:[%s4] sm:$0xf]
    %v157 = vld [vmem:[%s4 + $0x4] sm:$0xf]
    %v158 = vld [vmem:[%s4 + $0x8] sm:$0xf]
    %v159 = vld [vmem:[%s4 + $0xc] sm:$0xf]
    %v160 = vld [vmem:[%s4 + $0x10] sm:$0xf]
    %v161 = vld [vmem:[%s4 + $0x14] sm:$0xf]
    %v162 = vld [vmem:[%s4 + $0x18] sm:$0xf]
    %v163 = vld [vmem:[%s4 + $0x1c] sm:$0xf]
    %v164 = vld [vmem:[%s4 + $0x20] sm:$0xf]
    %v165 = vld [vmem:[%s4 + $0x24] sm:$0xf]
    %v166 = vld [vmem:[%s4 + $0x28] sm:$0xf]
    %v167 = vld [vmem:[%s4 + $0x2c] sm:$0xf]
    %v168 = vld [vmem:[%s4 + $0x30] sm:$0xf]
    %v169 = vld [vmem:[%s4 + $0x34] sm:$0xf]
    %v170 = vld [vmem:[%s4 + $0x38] sm:$0xf]
    %v171 = vld [vmem:[%s4 + $0x3c] sm:$0xf]
    %v172 = vld [vmem:[%s4 + $0x40] sm:$0xf]
    %v173 = vld [vmem:[%s4 + $0x44] sm:$0xf]
    %v174 = vld [vmem:[%s4 + $0x48] sm:$0xf]
    %v175 = vld [vmem:[%s4 + $0x4c] sm:$0xf]
    %v176 = vld [vmem:[%s4 + $0x50] sm:$0xf]
    %v177 = vld [vmem:[%s4 + $0x54] sm:$0xf]
    %v178 = vld [vmem:[%s4 + $0x58] sm:$0xf]
    %v179 = vld [vmem:[%s4 + $0x5c] sm:$0xf]
    %v180 = vld [vmem:[%s4 + $0x60] sm:$0xf]
    %v181 = vld [vmem:[%s4 + $0x64] sm:$0xf]
    %v182 = vld [vmem:[%s4 + $0x68] sm:$0xf]
    %v183 = vld [vmem:[%s4 + $0x6c] sm:$0xf]
    %v184 = vld [vmem:[%s4 + $0x70] sm:$0xf]
    %v185 = vld [vmem:[%s4 + $0x74] sm:$0xf]
    %v186 = vld [vmem:[%s4 + $0x78] sm:$0xf]
    %v187 = vld [vmem:[%s4 + $0x7c] sm:$0xf]
    %v188 = vld [vmem:[%s5] sm:$0x1]
    %v190 = vlaneseq
    %v191 = vshrl.u32 %v190, 7
    %v192 = vsub.s32 0, %v191
    %v193 = vrot.slane %v188, %v192
    %v227 = vunpack.c.l.b16 %v156
    %v228 = vunpack.c.l.b16 %v157
    %v229 = vunpack.c.l.b16 %v158
    %v230 = vunpack.c.l.b16 %v159
    %v231 = vunpack.c.l.b16 %v160
    %v232 = vunpack.c.l.b16 %v161
    %v233 = vunpack.c.l.b16 %v162
    %v234 = vunpack.c.l.b16 %v163
    %v235 = vunpack.c.l.b16 %v164
    %v236 = vunpack.c.l.b16 %v165
    %v237 = vunpack.c.l.b16 %v166
    %v238 = vunpack.c.l.b16 %v167
    %v239 = vunpack.c.l.b16 %v168
    %v240 = vunpack.c.l.b16 %v169
    %v241 = vunpack.c.l.b16 %v170
    %v242 = vunpack.c.l.b16 %v171
    %v243 = vunpack.c.l.b16 %v172
    %v244 = vunpack.c.l.b16 %v173
    %v245 = vunpack.c.l.b16 %v174
    %v246 = vunpack.c.l.b16 %v175
    %v247 = vunpack.c.l.b16 %v176
    %v248 = vunpack.c.l.b16 %v177
    %v249 = vunpack.c.l.b16 %v178
    %v250 = vunpack.c.l.b16 %v179
    %v251 = vunpack.c.l.b16 %v180
    %v252 = vunpack.c.l.b16 %v181
    %v253 = vunpack.c.l.b16 %v182
    %v254 = vunpack.c.l.b16 %v183
    %v255 = vunpack.c.l.b16 %v184
    %v256 = vunpack.c.l.b16 %v185
    %v257 = vunpack.c.l.b16 %v186
    %v258 = vunpack.c.l.b16 %v187
    %v259 = vpack.c.b16 %v228, %v227
    %v260 = vpack.c.b16 %v230, %v229
    %v261 = vpack.c.b16 %v232, %v231
    %v262 = vpack.c.b16 %v234, %v233
    %v263 = vpack.c.b16 %v236, %v235
    %v264 = vpack.c.b16 %v238, %v237
    %v265 = vpack.c.b16 %v240, %v239
    %v266 = vpack.c.b16 %v242, %v241
    %v267 = vpack.c.b16 %v244, %v243
    %v268 = vpack.c.b16 %v246, %v245
    %v269 = vpack.c.b16 %v248, %v247
    %v270 = vpack.c.b16 %v250, %v249
    %v271 = vpack.c.b16 %v252, %v251
    %v272 = vpack.c.b16 %v254, %v253
    %v273 = vpack.c.b16 %v256, %v255
    %v274 = vpack.c.b16 %v258, %v257
    %291 = vmatprep.subr.bf16.mxu0 0
    %292 = vmatpush1.bf16.msra.mxu0 %v266
    %293 = vmatprep.subr.bf16.mxu0 0
    %294 = vmatpush1.bf16.msra.mxu0 %v265
    %295 = vmatprep.subr.bf16.mxu0 0
    %296 = vmatpush1.bf16.msra.mxu0 %v264
    %297 = vmatprep.subr.bf16.mxu0 0
    %298 = vmatpush1.bf16.msra.mxu0 %v263
    %299 = vmatprep.subr.bf16.mxu0 0
    %300 = vmatpush1.bf16.msra.mxu0 %v262
    %301 = vmatprep.subr.bf16.mxu0 0
    %302 = vmatpush1.bf16.msra.mxu0 %v261
    %303 = vmatprep.subr.bf16.mxu0 0
    %304 = vmatpush1.bf16.msra.mxu0 %v260
    %305 = vmatprep.subr.bf16.mxu0 0
    %306 = vmatpush1.bf16.msra.mxu0 %v259
    %307 = vmatprep.subr.bf16.mxu0 0
    %308 = vmatpush2.bf16.msra.mxu0 %v274
    %309 = vmatprep.subr.bf16.mxu0 0
    %310 = vmatpush2.bf16.msra.mxu0 %v273
    %311 = vmatprep.subr.bf16.mxu0 0
    %312 = vmatpush2.bf16.msra.mxu0 %v272
    %313 = vmatprep.subr.bf16.mxu0 0
    %314 = vmatpush2.bf16.msra.mxu0 %v271
    %315 = vmatprep.subr.bf16.mxu0 0
    %316 = vmatpush2.bf16.msra.mxu0 %v270
    %317 = vmatprep.subr.bf16.mxu0 0
    %318 = vmatpush2.bf16.msra.mxu0 %v269
    %319 = vmatprep.subr.bf16.mxu0 0
    %320 = vmatpush2.bf16.msra.mxu0 %v268
    %321 = vmatprep.subr.bf16.mxu0 0
    %322 = vmatpush2.bf16.msra.mxu0 %v267
    %323 = vmatprep.mubr.bf16.mxu0 %v155
    %324 = vmatmul.mubr.bf16.gmra.mxu0 %v154
    %v325 = vpop.f32.mrf.mxu0
    %v326 = vadd.f32 %v193, %v325
    %v327 = vpop.f32.mrf.mxu0
    %v328 = vpop.f32.mrf.mxu0
    %v329 = vadd.f32 %v193, %v328
    %v330 = vpop.f32.mrf.mxu0
    %331 = vdwg.mxu0
    %s332 = smul.u32 0, 16
    %v333 = vlaneseq
    %v334 = vshrl.u32 %v333, 7
    %v335 = vadd.s32 %v334, 8
    %v336 = vstv %s332
    %v337 = vadd.s32 %v334, %v336
    %v338 = vadd.s32 %v335, %v336
    %v339 = vlaneseq
    %v340 = vand.u32 %v339, 127
    %s341 = sld [smem:[#allocation3]]
    %v342 = vmul.u32 %v337, 2654435761
    %v343 = vmul.u32 %v338, 2654435761
    %v344 = vmul.u32 %v340, 2246822519
    %v345 = vxor.u32 %v342, %v344
    %v346 = vxor.u32 %v343, %v344
    %s347 = smul.u32 %s341, 3266489917
    %v348 = vstv %s347
    %v349 = vadd.s32 %v345, %v348
    %v350 = vadd.s32 %v346, %v348
    %v351 = vshrl.u32 %v349, 16
    %v352 = vshrl.u32 %v350, 16
    %v353 = vxor.u32 %v349, %v351
    %v354 = vxor.u32 %v350, %v352
    %v355 = vmul.u32 %v353, 2146121005
    %v356 = vmul.u32 %v354, 2146121005
    %v357 = vshrl.u32 %v355, 15
    %v358 = vshrl.u32 %v356, 15
    %v359 = vxor.u32 %v355, %v357
    %v360 = vxor.u32 %v356, %v358
    %v361 = vmul.u32 %v359, 2221713035
    %v362 = vmul.u32 %v360, 2221713035
    %v363 = vshrl.u32 %v361, 16
    %v364 = vshrl.u32 %v362, 16
    %v365 = vxor.u32 %v361, %v363
    %v366 = vxor.u32 %v362, %v364
    %vm367 = vcmp.ge.u32.totalorder %v365, 858993459
    %vm368 = vcmp.ge.u32.totalorder %v366, 858993459
    %v369 = vmul.f32 %v326, 1.25
    %v370 = vmul.f32 %v329, 1.25
    %v371 = vsel %vm367, %v369, 0.0
    %v372 = vsel %vm368, %v370, 0.0
    %373 = vst.msk [vmem:[#allocation4] sm:$0xff] %vm87, %v371
    %374 = vst.msk [vmem:[#allocation4 + $0x8] sm:$0xff] %vm87, %v372
    // Predicated region
    $region22: #{tpu_custom_call.1} parent=1 // pred_check
      _
    $region23: #{tpu_custom_call.1} parent=1 // pred_check_branch
      %376 = sbr.rel (0) target = $region25
    $region24: #{tpu_custom_call.1} parent=1 // pred_region
      %s378 = ssub.s32 256, 256
      %379 = vsyncadd [#allocation5], %s378
      %s380 = sshll.u32 [#allocation4], 4
      %s381 = int_to_ptr.vmem [resolvable:$true] %s380
      %386 = dma.vmem_to_hbm [thread:$0]  %s381, 256, %s6, [#allocation5], 128, 128, 8
    $region25: #{tpu_custom_call.1} parent=1 // pred_fallthru
      _
    // Predicated region
    $region26: #{tpu_custom_call.1} parent=1 // pred_check
      _
    $region27: #{tpu_custom_call.1} parent=1 // pred_check_branch
      %388 = sbr.rel (0) target = $region29
    $region28: #{tpu_custom_call.1} parent=1 // pred_region
      %389 = dma.done [#allocation5], 256
    $region29: #{tpu_custom_call.1} parent=1 // pred_fallthru
      _
    %390 = vsyncpa [#allocation5], 1

</llo_original>
